<compile_context>
chip_gen: v7x
topology: tpu7x:2x2x1
jax: 0.10.0
libtpu: 0.0.40
codegen_flags: <defaults>
</compile_context>

<pallas_src>
import functools

import jax
import jax.numpy as jnp
from jax.experimental import pallas as pl
from jax.experimental.pallas import tpu as pltpu

LN_EPS = 1e-5


def _gelu_exact(x):
    # PyTorch nn.GELU() default: exact erf-based GELU.
    return 0.5 * x * (1.0 + jax.lax.erf(x * 0.7071067811865476))


# ---------------------------------------------------------------------------
# Fused kernel: grid = (batch_tiles, depth); one Block per depth step.
# ---------------------------------------------------------------------------
def _stacked_block_kernel(x_in_ref, g_ref, beta_ref, w_ref, b_ref, x_out_ref,
                          *, residual):
    d = pl.program_id(1)

    # Seed the VMEM-resident activation from the input on the first layer.
    @pl.when(d == 0)
    def _():
        x_out_ref[...] = x_in_ref[...]

    x = x_out_ref[...].astype(jnp.float32)

    # LayerNorm over the hidden (lane) dim, statistics in f32.
    mean = jnp.mean(x, axis=-1, keepdims=True)
    xc = x - mean
    var = jnp.mean(xc * xc, axis=-1, keepdims=True)
    xn = xc * jax.lax.rsqrt(var + LN_EPS)
    xn = xn * g_ref[...].astype(jnp.float32) + beta_ref[...].astype(jnp.float32)

    # Linear: activations cast to the weight dtype (bf16 by default) entering
    # the MXU, accumulate in f32.
    y = jnp.dot(xn.astype(w_ref.dtype), w_ref[...],
                preferred_element_type=jnp.float32)
    y = y + b_ref[...].astype(jnp.float32)

    # GELU epilogue once per output tile.  Dropout p=0.0 -> identity.
    y = _gelu_exact(y)
    if residual:
        y = x + y

    x_out_ref[...] = y.astype(x_out_ref.dtype)


def stacked_blocks(x, gamma, beta, w, b, *, residual=True,
                   weight_dtype=jnp.bfloat16, tm=None):
    """Applies `depth` Blocks:  x <- x + gelu(linear(layernorm(x)))  per layer.

    x:     [B, H] f32
    gamma: [depth, H]   beta: [depth, H]
    w:     [depth, H, H]   b: [depth, H]
    """
    depth, H, H2 = w.shape
    assert H == H2 and x.shape[-1] == H
    B = x.shape[0]

    # Batch tile: multiple of 8 sublanes (f32); cap so tiles stay modest.
    if tm is None:
        tm = 256 if B >= 256 else max(8, ((B + 7) // 8) * 8)
    Bp = ((B + tm - 1) // tm) * tm
    xp = x.astype(jnp.float32)
    if Bp != B:
        xp = jnp.pad(xp, ((0, Bp - B), (0, 0)))

    wq = w.astype(weight_dtype)
    g3 = gamma.reshape(depth, 1, H).astype(jnp.float32)
    be3 = beta.reshape(depth, 1, H).astype(jnp.float32)
    b3 = b.reshape(depth, 1, H).astype(jnp.float32)

    # VMEM budget: double-buffered weight slab + in/out activation tiles.
    w_bytes = H * H * jnp.dtype(weight_dtype).itemsize
    act_bytes = tm * H * 4
    vmem_limit = int(min(64 * 2 ** 20,
                         max(32 * 2 ** 20, 2 * (2 * w_bytes + 4 * act_bytes))))

    cost = pl.CostEstimate(
        flops=2 * Bp * H * H * depth + 12 * Bp * H * depth,
        transcendentals=Bp * H * depth,
        bytes_accessed=depth * (w_bytes + 3 * H * 4) + 2 * Bp * H * 4,
    )

    kern = functools.partial(_stacked_block_kernel, residual=residual)

    out = pl.pallas_call(
        kern,
        out_shape=jax.ShapeDtypeStruct((Bp, H), jnp.float32),
        grid_spec=pltpu.PrefetchScalarGridSpec(
            num_scalar_prefetch=0,
            grid=(Bp // tm, depth),
            in_specs=[
                pl.BlockSpec((tm, H), lambda i, d: (i, 0)),           # x (seed)
                pl.BlockSpec((None, 1, H), lambda i, d: (d, 0, 0)),   # gamma
                pl.BlockSpec((None, 1, H), lambda i, d: (d, 0, 0)),   # beta
                pl.BlockSpec((None, H, H), lambda i, d: (d, 0, 0)),   # W
                pl.BlockSpec((None, 1, H), lambda i, d: (d, 0, 0)),   # bias
            ],
            # Same block index across the depth axis -> VMEM-resident carry.
            out_specs=pl.BlockSpec((tm, H), lambda i, d: (i, 0)),
        ),
        compiler_params=pltpu.CompilerParams(
            dimension_semantics=("parallel", "arbitrary"),
            vmem_limit_bytes=vmem_limit,
        ),
        cost_estimate=cost,
        input_output_aliases={0: 0},   # activation updates in place in HBM
    )(xp, g3, be3, wq, b3)

    return out[:B]


def block_forward(x, gamma, beta, w, b, *, residual=True, **kw):
    """Exactly the original PyTorch Block.forward (dropout p=0.0)."""
    return stacked_blocks(x, gamma[None], beta[None], w[None], b[None],
                          residual=residual, **kw)


# ---------------------------------------------------------------------------
# Pure-JAX reference
# ---------------------------------------------------------------------------
def _ref_block(x, gamma, beta, w, b, residual=True):
    m = jnp.mean(x, axis=-1, keepdims=True)
    v = jnp.mean((x - m) ** 2, axis=-1, keepdims=True)
    xn = (x - m) / jnp.sqrt(v + LN_EPS) * gamma + beta
    y = jax.nn.gelu(xn @ w + b, approximate=False)
    return x + y if residual else y


if __name__ == "__main__":
    # Small deterministic config: batch=8, hidden=128 (lane-dense), depth=2.
    B, H, depth = 8, 128, 2
    key = jax.random.PRNGKey(0)
    kx, kg, kbt, kw, kb = jax.random.split(key, 5)

    x = jax.random.normal(kx, (B, H), jnp.float32)
    gamma = 1.0 + 0.1 * jax.random.normal(kg, (depth, H), jnp.float32)
    beta = 0.05 * jax.random.normal(kbt, (depth, H), jnp.float32)
    bound = float(1.0 / jnp.sqrt(jnp.float32(H)))
    w = jax.random.uniform(kw, (depth, H, H), jnp.float32, -bound, bound)
    b = jax.random.uniform(kb, (depth, H), jnp.float32, -bound, bound)

    # Reference: apply the Block forward `depth` times in f32.
    ref = x
    for l in range(depth):
        ref = _ref_block(ref, gamma[l], beta[l], w[l], b[l], residual=True)

    # Fused stack of residual Blocks, bf16 weights into the MXU.
    out = jax.block_until_ready(
        stacked_blocks(x, gamma, beta, w, b, residual=True))
    assert out.shape == (B, H)
    assert jnp.allclose(out, ref, atol=2e-2, rtol=2e-2), (
        f"max abs err {jnp.max(jnp.abs(out - ref))}")

    # f32-weight path: tight numerical check.
    out_f32 = jax.block_until_ready(
        stacked_blocks(x, gamma, beta, w, b, residual=True,
                       weight_dtype=jnp.float32))
    assert jnp.allclose(out_f32, ref, atol=1e-4, rtol=1e-4), (
        f"max abs err {jnp.max(jnp.abs(out_f32 - ref))}")

    # Single Block == the original PyTorch module (both residual settings).
    for res in (True, False):
        out1 = jax.block_until_ready(
            block_forward(x, gamma[0], beta[0], w[0], b[0],
                          residual=res, weight_dtype=jnp.float32))
        ref1 = _ref_block(x, gamma[0], beta[0], w[0], b[0], residual=res)
        assert jnp.allclose(out1, ref1, atol=1e-4, rtol=1e-4), (
            f"residual={res}: max abs err {jnp.max(jnp.abs(out1 - ref1))}")

    print("KERNEL_OK")
</pallas_src>

<mosaic_0001>
module attributes {stable_mosaic.version = 11 : i64} {
  func.func @_stacked_block_kernel(%arg0: i32, %arg1: i32, %arg2: memref<8x128xf32, #tpu.memory_space<vmem>>, %arg3: memref<1x1x128xf32, #tpu.memory_space<vmem>>, %arg4: memref<1x1x128xf32, #tpu.memory_space<vmem>>, %arg5: memref<1x128x128xbf16, #tpu.memory_space<vmem>>, %arg6: memref<1x1x128xf32, #tpu.memory_space<vmem>>, %arg7: memref<8x128xf32, #tpu.memory_space<vmem>>) attributes {dimension_semantics = [#tpu.dimension_semantics<parallel>, #tpu.dimension_semantics<arbitrary>], iteration_bounds = array<i64: 1, 2>, scalar_prefetch = 0 : i64, scratch_operands = 0 : i64, tpu.core_type = #tpu.core_type<tc>, window_params = [{transform_indices = @transform_0, window_bounds = array<i64: 8, 128>}, {transform_indices = @transform_1, window_bounds = array<i64: 1, 1, 128>}, {transform_indices = @transform_2, window_bounds = array<i64: 1, 1, 128>}, {transform_indices = @transform_3, window_bounds = array<i64: 1, 128, 128>}, {transform_indices = @transform_4, window_bounds = array<i64: 1, 1, 128>}, {transform_indices = @transform_5, window_bounds = array<i64: 8, 128>}]} {
    %c0_i32 = arith.constant 0 : i32
    %0 = arith.cmpi eq, %arg1, %c0_i32 : i32
    %1 = arith.extui %0 : i1 to i32
    %c0_i32_0 = arith.constant 0 : i32
    %2 = arith.cmpi ne, %1, %c0_i32_0 : i32
    scf.if %2 {
      %c0_24 = arith.constant 0 : index
      %c0_25 = arith.constant 0 : index
      %46 = vector.load %arg2[%c0_24, %c0_25] : memref<8x128xf32, #tpu.memory_space<vmem>>, vector<8x128xf32>
      %c0_26 = arith.constant 0 : index
      %c0_27 = arith.constant 0 : index
      %47 = vector.load %arg7[%c0_26, %c0_27] : memref<8x128xf32, #tpu.memory_space<vmem>>, vector<8x128xf32>
      tpu.vector_store %arg7[%c0_26, %c0_27], %46 {strides = array<i32>} : memref<8x128xf32, #tpu.memory_space<vmem>>, vector<8x128xf32>,
    } else {
    }
    %c0 = arith.constant 0 : index
    %c0_1 = arith.constant 0 : index
    %3 = vector.load %arg7[%c0, %c0_1] : memref<8x128xf32, #tpu.memory_space<vmem>>, vector<8x128xf32>
    %cst = arith.constant dense<0.000000e+00> : vector<8xf32>
    %4 = vector.multi_reduction <add>, %3, %cst [1] : vector<8x128xf32> to vector<8xf32>
    %5 = vector.shape_cast %4 : vector<8xf32> to vector<8x1xf32>
    %cst_2 = arith.constant 1.280000e+02 : f32
    %6 = vector.broadcast %cst_2 : f32 to vector<8x1xf32>
    %7 = arith.divf %5, %6 : vector<8x1xf32>
    %8 = vector.broadcast %7 : vector<8x1xf32> to vector<8x128xf32>
    %9 = arith.subf %3, %8 : vector<8x128xf32>
    %10 = arith.mulf %9, %9 : vector<8x128xf32>
    %cst_3 = arith.constant dense<0.000000e+00> : vector<8xf32>
    %11 = vector.multi_reduction <add>, %10, %cst_3 [1] : vector<8x128xf32> to vector<8xf32>
    %12 = vector.shape_cast %11 : vector<8xf32> to vector<8x1xf32>
    %cst_4 = arith.constant 1.280000e+02 : f32
    %13 = vector.broadcast %cst_4 : f32 to vector<8x1xf32>
    %14 = arith.divf %12, %13 : vector<8x1xf32>
    %cst_5 = arith.constant 9.99999974E-6 : f32
    %15 = vector.broadcast %cst_5 : f32 to vector<8x1xf32>
    %16 = arith.addf %14, %15 : vector<8x1xf32>
    %17 = math.rsqrt %16 : vector<8x1xf32>
    %18 = vector.broadcast %17 : vector<8x1xf32> to vector<8x128xf32>
    %19 = arith.mulf %9, %18 : vector<8x128xf32>
    %c0_6 = arith.constant 0 : index
    %c0_7 = arith.constant 0 : index
    %c0_8 = arith.constant 0 : index
    %20 = vector.load %arg3[%c0_6, %c0_7, %c0_8] : memref<1x1x128xf32, #tpu.memory_space<vmem>>, vector<1x1x128xf32>
    %21 = vector.shape_cast %20 : vector<1x1x128xf32> to vector<1x128xf32>
    %22 = vector.broadcast %21 : vector<1x128xf32> to vector<8x128xf32>
    %23 = arith.mulf %19, %22 : vector<8x128xf32>
    %c0_9 = arith.constant 0 : index
    %c0_10 = arith.constant 0 : index
    %c0_11 = arith.constant 0 : index
    %24 = vector.load %arg4[%c0_9, %c0_10, %c0_11] : memref<1x1x128xf32, #tpu.memory_space<vmem>>, vector<1x1x128xf32>
    %25 = vector.shape_cast %24 : vector<1x1x128xf32> to vector<1x128xf32>
    %26 = vector.broadcast %25 : vector<1x128xf32> to vector<8x128xf32>
    %27 = arith.addf %23, %26 : vector<8x128xf32>
    %28 = arith.truncf %27 : vector<8x128xf32> to vector<8x128xbf16>
    %c0_12 = arith.constant 0 : index
    %c0_13 = arith.constant 0 : index
    %c0_14 = arith.constant 0 : index
    %29 = vector.load %arg5[%c0_12, %c0_13, %c0_14] : memref<1x128x128xbf16, #tpu.memory_space<vmem>>, vector<1x128x128xbf16>
    %30 = vector.shape_cast %29 : vector<1x128x128xbf16> to vector<128x128xbf16>
    %cst_15 = arith.constant dense<0.000000e+00> : vector<8x128xf32>
    %31 = tpu.matmul %28, %30, %cst_15 {dimension_numbers = #tpu.dot_dimension_numbers<[1], [0], [0], [1], [0, 0, 1, 1], [], []>} : vector<8x128xbf16>, vector<128x128xbf16>, vector<8x128xf32> -> vector<8x128xf32>
    %c0_16 = arith.constant 0 : index
    %c0_17 = arith.constant 0 : index
    %c0_18 = arith.constant 0 : index
    %32 = vector.load %arg6[%c0_16, %c0_17, %c0_18] : memref<1x1x128xf32, #tpu.memory_space<vmem>>, vector<1x1x128xf32>
    %33 = vector.shape_cast %32 : vector<1x1x128xf32> to vector<1x128xf32>
    %34 = vector.broadcast %33 : vector<1x128xf32> to vector<8x128xf32>
    %35 = arith.addf %31, %34 : vector<8x128xf32>
    %cst_19 = arith.constant 5.000000e-01 : f32
    %36 = vector.broadcast %cst_19 : f32 to vector<8x128xf32>
    %37 = arith.mulf %36, %35 : vector<8x128xf32>
    %cst_20 = arith.constant 0.707106769 : f32
    %38 = vector.broadcast %cst_20 : f32 to vector<8x128xf32>
    %39 = arith.mulf %35, %38 : vector<8x128xf32>
    %40 = math.erf %39 : vector<8x128xf32>
    %cst_21 = arith.constant 1.000000e+00 : f32
    %41 = vector.broadcast %cst_21 : f32 to vector<8x128xf32>
    %42 = arith.addf %41, %40 : vector<8x128xf32>
    %43 = arith.mulf %37, %42 : vector<8x128xf32>
    %44 = arith.addf %3, %43 : vector<8x128xf32>
    %c0_22 = arith.constant 0 : index
    %c0_23 = arith.constant 0 : index
    %45 = vector.load %arg7[%c0_22, %c0_23] : memref<8x128xf32, #tpu.memory_space<vmem>>, vector<8x128xf32>
    tpu.vector_store %arg7[%c0_22, %c0_23], %44 {strides = array<i32>} : memref<8x128xf32, #tpu.memory_space<vmem>>, vector<8x128xf32>,
    return
  }
  func.func @transform_0(%arg0: i32, %arg1: i32) -> (i32, i32) {
    %c0_i32 = arith.constant 0 : i32
    %c0_i32_0 = arith.constant 0 : i32
    return %arg0, %c0_i32 : i32, i32
  }
  func.func @transform_1(%arg0: i32, %arg1: i32) -> (i32, i32, i32) {
    %c0_i32 = arith.constant 0 : i32
    %c0_i32_0 = arith.constant 0 : i32
    %c0_i32_1 = arith.constant 0 : i32
    return %arg1, %c0_i32, %c0_i32_0 : i32, i32, i32
  }
  func.func @transform_2(%arg0: i32, %arg1: i32) -> (i32, i32, i32) {
    %c0_i32 = arith.constant 0 : i32
    %c0_i32_0 = arith.constant 0 : i32
    %c0_i32_1 = arith.constant 0 : i32
    return %arg1, %c0_i32, %c0_i32_0 : i32, i32, i32
  }
  func.func @transform_3(%arg0: i32, %arg1: i32) -> (i32, i32, i32) {
    %c0_i32 = arith.constant 0 : i32
    %c0_i32_0 = arith.constant 0 : i32
    %c0_i32_1 = arith.constant 0 : i32
    return %arg1, %c0_i32, %c0_i32_0 : i32, i32, i32
  }
  func.func @transform_4(%arg0: i32, %arg1: i32) -> (i32, i32, i32) {
    %c0_i32 = arith.constant 0 : i32
    %c0_i32_0 = arith.constant 0 : i32
    %c0_i32_1 = arith.constant 0 : i32
    return %arg1, %c0_i32, %c0_i32_0 : i32, i32, i32
  }
  func.func @transform_5(%arg0: i32, %arg1: i32) -> (i32, i32) {
    %c0_i32 = arith.constant 0 : i32
    %c0_i32_0 = arith.constant 0 : i32
    return %arg0, %c0_i32 : i32, i32
  }
}

</mosaic_0001>

<llo_original>
// kernel: tpu_custom_call.1
$region0: #{tpu_custom_call.1}
  #allocation0 [shape = 'u32[]', space=smem, size = 0x4, offset = 0x4, fixed_abs, tag = 'smem constant byte address 0x4 - core index']
  #allocation1 [shape = 'u32[144,128]{1,0:T(1,128)}', space=vmem, size = 0x12000, scoped, tag = 'internal scratch']
  %s0 = inlined_call_operand.hbm [shape: f32[8,128], index: 0, kind: input, shape index: {}, may-alias: {0,5}]
  %s1 = inlined_call_operand.vmem [shape: f32[2,1,128], index: 1, kind: input, shape index: {}]
  %s2 = inlined_call_operand.vmem [shape: f32[2,1,128], index: 2, kind: input, shape index: {}]
  %s3 = inlined_call_operand.hbm [shape: bf16[2,128,128], index: 3, kind: input, shape index: {}]
  %s4 = inlined_call_operand.vmem [shape: f32[2,1,128], index: 4, kind: input, shape index: {}]
  %s5 = inlined_call_operand.hbm [shape: f32[8,128], index: 5, kind: output, shape index: {}, may-alias: {0,5}]
  %s6 = sld [smem:[#allocation0]]
  $region65: #{tpu_custom_call.1} parent=0
    _
  %s8 = ssub.s32 1, %s6
  %s9 = scalar_select 0, %s8, %s6
  $region1: #{tpu_custom_call.1} parent=0
    #allocation2 [shape = 'u8[4096]{0}', space=vmem, size = 0x1000, scoped, tag = 'input window, operand 0, single buffered']
    #allocation3 [shape = 's32[2]{0}', space=sflag, size = 0x8, scoped, tag = 'scoped memory for tpu_custom_call.1']
    #allocation4 [shape = 's32[2]{0}', space=sflag, size = 0x8, scoped, tag = 'scoped memory for tpu_custom_call.1']
    #allocation5 [shape = 'u8[65536]{0}', space=vmem, size = 0x10000, scoped, tag = 'input window, operand 3']
    #allocation6 [shape = 's32[2]{0}', space=sflag, size = 0x8, scoped, tag = 'scoped memory for tpu_custom_call.1']
    #allocation7 [shape = 'u8[4096]{0}', space=vmem, size = 0x1000, scoped, tag = 'output window, operand 0, single buffered']
    %10 = vsyncpa [#allocation3], 0
    %11 = vsyncpa [#allocation6], 0
    %s12 = scalar_lea.sflag [#allocation6], 1
    %13 = vsyncpa %s12, 0
    %14 = vsyncpa [#allocation4], 0
    loop: start=0, step=1, limit=4
    $region2: #{tpu_custom_call.1} parent=1 // loop_pre_header
      _
    $region3: #{tpu_custom_call.1} parent=1 // loop_header
      %s16 = sphi 0, %s20
      %p17 = scmp.ge.s32.totalorder %s16, 4
      %s23 = sphi 0, %s35
      %s24 = sphi 0, %s31
      %s25 = sphi 0, %s23
      %s26 = sphi 0, %s24
      %s27 = sphi 0, %s25
      %s28 = sphi 0, %s26
      %s38 = sphi 0, %s40
      %s41 = sphi 0, %s38
      %s42 = sphi 0, %s41
      %s58 = sphi 0, %s42
      %s64 = sphi 0, %s66
      %s67 = sphi 0, %s64
      %s68 = sphi 0, %s67
      %s84 = sphi 0, %s68
      %s90 = sphi 0, %s92
      %s93 = sphi 0, %s90
      %s94 = sphi 0, %s93
      %s110 = sphi 0, %s94
      %s116 = sphi 0, %s118
      %s119 = sphi 0, %s116
      %s120 = sphi 0, %s119
      %s136 = sphi 0, %s120
      %s142 = sphi 0, %s144
      %s145 = sphi 0, %s142
      %s146 = sphi 0, %s145
      %s162 = sphi 0, %s146
      %s168 = sphi 0, %s170
      %s171 = sphi 0, %s168
      %s172 = sphi 0, %s171
      %s188 = sphi 0, %s172
    $region4: #{tpu_custom_call.1} parent=1 // loop_header_branch
      %19 = sbr.rel (%p17) target = $region8
    $region5: #{tpu_custom_call.1} parent=1 // loop_body
      %s21 = ssub.s32 %s16, 1
      %s22 = ssub.s32 %s16, 2
      %s29 = sadd.s32 1, %s24
      %p30 = scmp.ge.s32.totalorder %s29, 2
      %s31 = scalar_select %p30, 0, %s29
      %s32 = sadd.s32 1, %s23
      %s33 = scalar_select %p30, %s32, %s23
      %p34 = scmp.ge.s32.totalorder %s33, 1
      %s35 = scalar_select %p34, 0, %s33
      %s36 = ssub.s32 %s23, %s35
      %p37 = scmp.eq.s32.totalorder %s36, 0
      %s39 = sadd.s32 %s38, 1
      %s40 = scalar_select %p37, %s38, %s39
      %p43 = pneg %p37
      %p44 = scmp.eq.s32.totalorder %s16, 1
      %p45 = por %p43, %p44
      %p46 = scmp.ne.s32.totalorder %s38, %s41
      %p47 = scmp.eq.s32.totalorder %s16, 0
      %p48 = por %p46, %p47
      %p49 = scmp.ne.s32.totalorder %s38, %s41
      %p50 = scmp.eq.s32.totalorder %s21, 1
      %p51 = por %p49, %p50
      %p52 = scmp.ne.s32.totalorder %s41, %s42
      %p53 = scmp.eq.s32.totalorder %s21, 0
      %p54 = por %p52, %p53
      %p55 = scmp.ne.s32.totalorder %s41, %s42
      %p56 = scmp.eq.s32.totalorder %s22, 1
      %p57 = por %p55, %p56
      %p59 = scmp.ne.s32.totalorder %s42, %s58
      %p60 = scmp.eq.s32.totalorder %s22, 0
      %p61 = por %p59, %p60
      %s62 = ssub.s32 %s24, %s31
      %p63 = scmp.eq.s32.totalorder %s62, 0
      %s65 = sadd.s32 %s64, 1
      %s66 = scalar_select %p63, %s64, %s65
      %p69 = pneg %p63
      %p70 = scmp.eq.s32.totalorder %s16, 1
      %p71 = por %p69, %p70
      %p72 = scmp.ne.s32.totalorder %s64, %s67
      %p73 = scmp.eq.s32.totalorder %s16, 0
      %p74 = por %p72, %p73
      %p75 = scmp.ne.s32.totalorder %s64, %s67
      %p76 = scmp.eq.s32.totalorder %s21, 1
      %p77 = por %p75, %p76
      %p78 = scmp.ne.s32.totalorder %s67, %s68
      %p79 = scmp.eq.s32.totalorder %s21, 0
      %p80 = por %p78, %p79
      %p81 = scmp.ne.s32.totalorder %s67, %s68
      %p82 = scmp.eq.s32.totalorder %s22, 1
      %p83 = por %p81, %p82
      %p85 = scmp.ne.s32.totalorder %s68, %s84
      %p86 = scmp.eq.s32.totalorder %s22, 0
      %p87 = por %p85, %p86
      %s88 = ssub.s32 %s24, %s31
      %p89 = scmp.eq.s32.totalorder %s88, 0
      %s91 = sadd.s32 %s90, 1
      %s92 = scalar_select %p89, %s90, %s91
      %p95 = pneg %p89
      %p96 = scmp.eq.s32.totalorder %s16, 1
      %p97 = por %p95, %p96
      %p98 = scmp.ne.s32.totalorder %s90, %s93
      %p99 = scmp.eq.s32.totalorder %s16, 0
      %p100 = por %p98, %p99
      %p101 = scmp.ne.s32.totalorder %s90, %s93
      %p102 = scmp.eq.s32.totalorder %s21, 1
      %p103 = por %p101, %p102
      %p104 = scmp.ne.s32.totalorder %s93, %s94
      %p105 = scmp.eq.s32.totalorder %s21, 0
      %p106 = por %p104, %p105
      %p107 = scmp.ne.s32.totalorder %s93, %s94
      %p108 = scmp.eq.s32.totalorder %s22, 1
      %p109 = por %p107, %p108
      %p111 = scmp.ne.s32.totalorder %s94, %s110
      %p112 = scmp.eq.s32.totalorder %s22, 0
      %p113 = por %p111, %p112
      %s114 = ssub.s32 %s24, %s31
      %p115 = scmp.eq.s32.totalorder %s114, 0
      %s117 = sadd.s32 %s116, 1
      %s118 = scalar_select %p115, %s116, %s117
      %p121 = pneg %p115
      %p122 = scmp.eq.s32.totalorder %s16, 1
      %p123 = por %p121, %p122
      %p124 = scmp.ne.s32.totalorder %s116, %s119
      %p125 = scmp.eq.s32.totalorder %s16, 0
      %p126 = por %p124, %p125
      %p127 = scmp.ne.s32.totalorder %s116, %s119
      %p128 = scmp.eq.s32.totalorder %s21, 1
      %p129 = por %p127, %p128
      %p130 = scmp.ne.s32.totalorder %s119, %s120
      %p131 = scmp.eq.s32.totalorder %s21, 0
      %p132 = por %p130, %p131
      %p133 = scmp.ne.s32.totalorder %s119, %s120
      %p134 = scmp.eq.s32.totalorder %s22, 1
      %p135 = por %p133, %p134
      %p137 = scmp.ne.s32.totalorder %s120, %s136
      %p138 = scmp.eq.s32.totalorder %s22, 0
      %p139 = por %p137, %p138
      %s140 = ssub.s32 %s24, %s31
      %p141 = scmp.eq.s32.totalorder %s140, 0
      %s143 = sadd.s32 %s142, 1
      %s144 = scalar_select %p141, %s142, %s143
      %p147 = pneg %p141
      %p148 = scmp.eq.s32.totalorder %s16, 1
      %p149 = por %p147, %p148
      %p150 = scmp.ne.s32.totalorder %s142, %s145
      %p151 = scmp.eq.s32.totalorder %s16, 0
      %p152 = por %p150, %p151
      %p153 = scmp.ne.s32.totalorder %s142, %s145
      %p154 = scmp.eq.s32.totalorder %s21, 1
      %p155 = por %p153, %p154
      %p156 = scmp.ne.s32.totalorder %s145, %s146
      %p157 = scmp.eq.s32.totalorder %s21, 0
      %p158 = por %p156, %p157
      %p159 = scmp.ne.s32.totalorder %s145, %s146
      %p160 = scmp.eq.s32.totalorder %s22, 1
      %p161 = por %p159, %p160
      %p163 = scmp.ne.s32.totalorder %s146, %s162
      %p164 = scmp.eq.s32.totalorder %s22, 0
      %p165 = por %p163, %p164
      %s166 = ssub.s32 %s23, %s35
      %p167 = scmp.eq.s32.totalorder %s166, 0
      %s169 = sadd.s32 %s168, 1
      %s170 = scalar_select %p167, %s168, %s169
      %p173 = pneg %p167
      %p174 = scmp.eq.s32.totalorder %s16, 1
      %p175 = por %p173, %p174
      %p176 = scmp.ne.s32.totalorder %s168, %s171
      %p177 = scmp.eq.s32.totalorder %s16, 0
      %p178 = por %p176, %p177
      %p179 = scmp.ne.s32.totalorder %s168, %s171
      %p180 = scmp.eq.s32.totalorder %s21, 1
      %p181 = por %p179, %p180
      %p182 = scmp.ne.s32.totalorder %s171, %s172
      %p183 = scmp.eq.s32.totalorder %s21, 0
      %p184 = por %p182, %p183
      %p185 = scmp.ne.s32.totalorder %s171, %s172
      %p186 = scmp.eq.s32.totalorder %s22, 1
      %p187 = por %p185, %p186
      %p189 = scmp.ne.s32.totalorder %s172, %s188
      %p190 = scmp.eq.s32.totalorder %s22, 0
      %p191 = por %p189, %p190
      %p192 = scmp.le.s32.totalorder 1, %s16
      %p193 = scmp.lt.s32.totalorder %s16, 3
      %p194 = pnand %p192, %p193
      %p195 = pneg %p194
      // Predicated region
      $region9: #{tpu_custom_call.1} parent=5 // pred_check
        _
      $region10: #{tpu_custom_call.1} parent=5 // pred_check_branch
        %197 = sbr.rel (%p194) target = $region12
      $region11: #{tpu_custom_call.1} parent=5 // pred_region
        %s198 = ssub.s32 %s16, 1
        // Predicated region
        $region13: #{tpu_custom_call.1} parent=11 // pred_check
          %p199 = pneg %p54
        $region14: #{tpu_custom_call.1} parent=11 // pred_check_branch
          %201 = sbr.rel (%p199) target = $region16
        $region15: #{tpu_custom_call.1} parent=11 // pred_region
          %s203 = ssub.s32 128, 128
          %204 = vsyncadd [#allocation3], %s203
          %s205 = smul.addr %s25, 128
          %s206 = scalar_lea.hbm %s0, %s205
          %s208 = sshll.u32 [#allocation2], 4
          %s209 = int_to_ptr.vmem [resolvable:$true] %s208
          %211 = dma.hbm_to_vmem [thread:$0]  %s206, 128, %s209, [#allocation3]
        $region16: #{tpu_custom_call.1} parent=11 // pred_fallthru
          _
      $region12: #{tpu_custom_call.1} parent=5 // pred_fallthru
        _
      %p212 = scmp.lt.s32.totalorder %s16, 2
      // Predicated region
      $region17: #{tpu_custom_call.1} parent=5 // pred_check
        %p213 = pneg %p212
      $region18: #{tpu_custom_call.1} parent=5 // pred_check_branch
        %215 = sbr.rel (%p213) target = $region20
      $region19: #{tpu_custom_call.1} parent=5 // pred_region
        // Predicated region
        $region21: #{tpu_custom_call.1} parent=19 // pred_check
          %p216 = pneg %p74
        $region22: #{tpu_custom_call.1} parent=19 // pred_check_branch
          %218 = sbr.rel (%p216) target = $region24
        $region23: #{tpu_custom_call.1} parent=19 // pred_region
          %p219 = scmp.lt.s32.totalorder %s24, 1
          %s220 = scalar_select %p219, %s24, 1
          %s221 = scalar_lea.vmem %s1, %s220
        $region24: #{tpu_custom_call.1} parent=19 // pred_fallthru
          _
        // Predicated region
        $region25: #{tpu_custom_call.1} parent=19 // pred_check
          %p222 = pneg %p100
        $region26: #{tpu_custom_call.1} parent=19 // pred_check_branch
          %224 = sbr.rel (%p222) target = $region28
        $region27: #{tpu_custom_call.1} parent=19 // pred_region
          %p225 = scmp.lt.s32.totalorder %s24, 1
          %s226 = scalar_select %p225, %s24, 1
          %s227 = scalar_lea.vmem %s2, %s226
        $region28: #{tpu_custom_call.1} parent=19 // pred_fallthru
          _
        // Predicated region
        $region29: #{tpu_custom_call.1} parent=19 // pred_check
          %p228 = pneg %p126
        $region30: #{tpu_custom_call.1} parent=19 // pred_check_branch
          %230 = sbr.rel (%p228) target = $region32
        $region31: #{tpu_custom_call.1} parent=19 // pred_region
          %s231 = sand.u32 %s116, 1
          %s232 = scalar_lea.sflag [#allocation6], %s231
          %s233 = sand.u32 %s116, 1
          %s234 = smul.addr %s233, 64
          %s235 = scalar_lea.vmem [#allocation5], %s234
          %s237 = ssub.s32 1024, 1024
          %238 = vsyncadd %s232, %s237
          %s239 = smul.addr %s24, 16
          %s240 = smul.addr %s239, 64
          %s241 = scalar_lea.hbm %s3, %s240
          %s242 = sshll.u32 %s235, 4
          %s243 = int_to_ptr.vmem [resolvable:$true] %s242
          %248 = dma.hbm_to_vmem [thread:$0]  %s241, 1024, %s243, %s232, 64, 64, 4
        $region32: #{tpu_custom_call.1} parent=19 // pred_fallthru
          _
        // Predicated region
        $region33: #{tpu_custom_call.1} parent=19 // pred_check
          %p249 = pneg %p152
        $region34: #{tpu_custom_call.1} parent=19 // pred_check_branch
          %251 = sbr.rel (%p249) target = $region36
        $region35: #{tpu_custom_call.1} parent=19 // pred_region
          %p252 = scmp.lt.s32.totalorder %s24, 1
          %s253 = scalar_select %p252, %s24, 1
          %s254 = scalar_lea.vmem %s4, %s253
        $region36: #{tpu_custom_call.1} parent=19 // pred_fallthru
          _
      $region20: #{tpu_custom_call.1} parent=5 // pred_fallthru
        _
      %p255 = scmp.le.s32.totalorder 1, %s16
      %p256 = scmp.lt.s32.totalorder %s16, 3
      %p257 = pnand %p255, %p256
      %p258 = pneg %p257
      // Predicated region
      $region37: #{tpu_custom_call.1} parent=5 // pred_check
        _
      $region38: #{tpu_custom_call.1} parent=5 // pred_check_branch
        %260 = sbr.rel (%p257) target = $region40
      $region39: #{tpu_custom_call.1} parent=5 // pred_region
        %s261 = ssub.s32 %s16, 1
        // Predicated region
        $region41: #{tpu_custom_call.1} parent=39 // pred_check
          %p262 = pneg %p54
        $region42: #{tpu_custom_call.1} parent=39 // pred_check_branch
          %264 = sbr.rel (%p262) target = $region44
        $region43: #{tpu_custom_call.1} parent=39 // pred_region
          %265 = dma.done [#allocation3], 128
        $region44: #{tpu_custom_call.1} parent=39 // pred_fallthru
          _
        %s266 = sand.u32 %s119, 1
        %s267 = scalar_lea.sflag [#allocation6], %s266
        %s268 = sand.u32 %s119, 1
        %s269 = smul.addr %s268, 64
        %s270 = scalar_lea.vmem [#allocation5], %s269
        // Predicated region
        $region45: #{tpu_custom_call.1} parent=39 // pred_check
          %p271 = pneg %p132
        $region46: #{tpu_custom_call.1} parent=39 // pred_check_branch
          %273 = sbr.rel (%p271) target = $region48
        $region47: #{tpu_custom_call.1} parent=39 // pred_region
          %274 = dma.done %s267, 1024
        $region48: #{tpu_custom_call.1} parent=39 // pred_fallthru
          _
        %p275 = pneg %p54
        %p276 = pneg %p51
        %p277 = scmp.lt.s32.totalorder %s26, 1
        %s278 = scalar_select %p277, %s26, 1
        %s279 = scalar_lea.vmem %s1, %s278
        %p280 = pneg %p80
        %p281 = pneg %p77
        %p282 = scmp.lt.s32.totalorder %s26, 1
        %s283 = scalar_select %p282, %s26, 1
        %s284 = scalar_lea.vmem %s2, %s283
        %p285 = pneg %p106
        %p286 = pneg %p103
        %s287 = sand.u32 %s119, 1
        %s288 = scalar_lea.sflag [#allocation6], %s287
        %s289 = sand.u32 %s119, 1
        %s290 = smul.addr %s289, 64
        %s291 = scalar_lea.vmem [#allocation5], %s290
        %p292 = pneg %p132
        %p293 = pneg %p129
        %p294 = scmp.lt.s32.totalorder %s26, 1
        %s295 = scalar_select %p294, %s26, 1
        %s296 = scalar_lea.vmem %s4, %s295
        %p297 = pneg %p158
        %p298 = pneg %p155
        %p299 = pneg %p184
        %p300 = pneg %p181
        %p301 = scmp.lt.s32.totalorder %s26, 1
        %s302 = scalar_select %p301, %s26, 1
        %s303 = scalar_lea.vmem %s1, %s302
        %p304 = scmp.lt.s32.totalorder %s26, 1
        %s305 = scalar_select %p304, %s26, 1
        %s306 = scalar_lea.vmem %s2, %s305
        %p307 = scmp.lt.s32.totalorder %s26, 1
        %s308 = scalar_select %p307, %s26, 1
        %s309 = scalar_lea.vmem %s4, %s308
        %p311 = scmp.eq.s32.totalorder %s26, 0
        // Predicated region
        $region49: #{tpu_custom_call.1} parent=39 // pred_check
          %p312 = pneg %p311
        $region50: #{tpu_custom_call.1} parent=39 // pred_check_branch
          %314 = sbr.rel (%p312) target = $region52
        $region51: #{tpu_custom_call.1} parent=39 // pred_region
          %v315 = vld [vmem:[#allocation2] sm:$0xff]
          %316 = vst [vmem:[#allocation7] sm:$0xff] %v315
        $region52: #{tpu_custom_call.1} parent=39 // pred_fallthru
          _
        %v317 = vld [vmem:[#allocation7] sm:$0xff]
        %318 = vadd.xlane.f32.xlu0 %v317
        %v319 = vpop.xlane.xlu0 %318
        %v320 = vrcp.pop 128.0
        %v321 = vmul.f32 %v319, %v320
        %v322 = vsub.f32 %v317, %v321
        %v323 = vmul.f32 %v322, %v322
        %324 = vadd.xlane.f32.xlu0 %v323
        %v325 = vpop.xlane.xlu0 %324
        %v326 = vmul.f32 %v325, %v320
        %v327 = vadd.f32 %v326, 1e-05
        %v328 = vrsqrt.pop %v327
        %v329 = vmul.f32 %v322, %v328
        %v330 = vld [vmem:[%s303] sm:$0x1]
        %v332 = vlaneseq
        %v333 = vshrl.u32 %v332, 7
        %v334 = vsub.s32 0, %v333
        %v335 = vrot.slane %v330, %v334
        %v337 = vmul.f32 %v329, %v335
        %v338 = vld [vmem:[%s306] sm:$0x1]
        %v340 = vlaneseq
        %v341 = vshrl.u32 %v340, 7
        %v342 = vsub.s32 0, %v341
        %v343 = vrot.slane %v338, %v342
        %v345 = vadd.f32 %v337, %v343
        %v346 = vpack.c.bf16 %v345, %v345
        %v347 = vld [vmem:[%s270] sm:$0xf]
        %v348 = vld [vmem:[%s270 + $0x4] sm:$0xf]
        %v349 = vld [vmem:[%s270 + $0x8] sm:$0xf]
        %v350 = vld [vmem:[%s270 + $0xc] sm:$0xf]
        %v351 = vld [vmem:[%s270 + $0x10] sm:$0xf]
        %v352 = vld [vmem:[%s270 + $0x14] sm:$0xf]
        %v353 = vld [vmem:[%s270 + $0x18] sm:$0xf]
        %v354 = vld [vmem:[%s270 + $0x1c] sm:$0xf]
        %v355 = vld [vmem:[%s270 + $0x20] sm:$0xf]
        %v356 = vld [vmem:[%s270 + $0x24] sm:$0xf]
        %v357 = vld [vmem:[%s270 + $0x28] sm:$0xf]
        %v358 = vld [vmem:[%s270 + $0x2c] sm:$0xf]
        %v359 = vld [vmem:[%s270 + $0x30] sm:$0xf]
        %v360 = vld [vmem:[%s270 + $0x34] sm:$0xf]
        %v361 = vld [vmem:[%s270 + $0x38] sm:$0xf]
        %v362 = vld [vmem:[%s270 + $0x3c] sm:$0xf]
        %v363 = vld [vmem:[%s309] sm:$0x1]
        %v365 = vlaneseq
        %v366 = vshrl.u32 %v365, 7
        %v367 = vsub.s32 0, %v366
        %v368 = vrot.slane %v363, %v367
        %v386 = vunpack.c.l.b16 %v347
        %v387 = vunpack.c.l.b16 %v348
        %v388 = vunpack.c.l.b16 %v349
        %v389 = vunpack.c.l.b16 %v350
        %v390 = vunpack.c.l.b16 %v351
        %v391 = vunpack.c.l.b16 %v352
        %v392 = vunpack.c.l.b16 %v353
        %v393 = vunpack.c.l.b16 %v354
        %v394 = vunpack.c.l.b16 %v355
        %v395 = vunpack.c.l.b16 %v356
        %v396 = vunpack.c.l.b16 %v357
        %v397 = vunpack.c.l.b16 %v358
        %v398 = vunpack.c.l.b16 %v359
        %v399 = vunpack.c.l.b16 %v360
        %v400 = vunpack.c.l.b16 %v361
        %v401 = vunpack.c.l.b16 %v362
        %v402 = vpack.c.b16 %v387, %v386
        %v403 = vpack.c.b16 %v389, %v388
        %v404 = vpack.c.b16 %v391, %v390
        %v405 = vpack.c.b16 %v393, %v392
        %v406 = vpack.c.b16 %v395, %v394
        %v407 = vpack.c.b16 %v397, %v396
        %v408 = vpack.c.b16 %v399, %v398
        %v409 = vpack.c.b16 %v401, %v400
        %418 = vmatprep.subr.bf16.mxu0 0
        %419 = vmatpush1.bf16.msra.mxu0 %v402
        %420 = vmatprep.subr.bf16.mxu0 0
        %421 = vmatpush1.bf16.msra.mxu0 %v403
        %422 = vmatprep.subr.bf16.mxu0 0
        %423 = vmatpush1.bf16.msra.mxu0 %v404
        %424 = vmatprep.subr.bf16.mxu0 0
        %425 = vmatpush1.bf16.msra.mxu0 %v405
        %426 = vmatprep.subr.bf16.mxu0 0
        %427 = vmatpush1.bf16.msra.mxu0 %v406
        %428 = vmatprep.subr.bf16.mxu0 0
        %429 = vmatpush1.bf16.msra.mxu0 %v407
        %430 = vmatprep.subr.bf16.mxu0 0
        %431 = vmatpush1.bf16.msra.mxu0 %v408
        %432 = vmatprep.subr.bf16.mxu0 0
        %433 = vmatpush1.bf16.msra.mxu0 %v409
        %434 = vmatprep.subr.bf16.mxu0 0
        %435 = vmatpush1.bf16.msra.mxu0 0
        %436 = vmatprep.subr.bf16.mxu0 0
        %437 = vmatpush1.bf16.msra.mxu0 0
        %438 = vmatprep.subr.bf16.mxu0 0
        %439 = vmatpush1.bf16.msra.mxu0 0
        %440 = vmatprep.subr.bf16.mxu0 0
        %441 = vmatpush1.bf16.msra.mxu0 0
        %442 = vmatprep.subr.bf16.mxu0 0
        %443 = vmatpush1.bf16.msra.mxu0 0
        %444 = vmatprep.subr.bf16.mxu0 0
        %445 = vmatpush1.bf16.msra.mxu0 0
        %446 = vmatprep.subr.bf16.mxu0 0
        %447 = vmatpush1.bf16.msra.mxu0 0
        %448 = vmatprep.subr.bf16.mxu0 0
        %449 = vmatpush1.bf16.msra.mxu0 0
        %450 = vmatprep.mubr.bf16.mxu0 0
        %451 = vmatmul.mubr.bf16.gmra.mrb[0].mxu0 %v346
        %v452 = vpop.f32.mrb[0].mxu0
        %v453 = vadd.f32 %v368, %v452
        %v454 = vpop.f32.mrb[0].mxu0
        %v455 = vpop.f32.mrb[0].mxu0
        %v456 = vpop.f32.mrb[0].mxu0
        %457 = vdwg.mxu0
        %v458 = vmul.f32 %v453, 0.5
        %v459 = vmul.f32 %v453, 0.70710677
        %v460 = verf.f32.pop %v459
        %v461 = vadd.f32 %v460, 1.0
        %v462 = vmul.f32 %v458, %v461
        %v463 = vadd.f32 %v317, %v462
        %464 = vst [vmem:[#allocation7] sm:$0xff] %v463
        // Predicated region
        $region53: #{tpu_custom_call.1} parent=39 // pred_check
          %p465 = pneg %p181
        $region54: #{tpu_custom_call.1} parent=39 // pred_check_branch
          %467 = sbr.rel (%p465) target = $region56
        $region55: #{tpu_custom_call.1} parent=39 // pred_region
          %s469 = ssub.s32 128, 128
          %470 = vsyncadd [#allocation4], %s469
          %s471 = smul.addr %s25, 128
          %s472 = scalar_lea.hbm %s5, %s471
          %s474 = sshll.u32 [#allocation7], 4
          %s475 = int_to_ptr.vmem [resolvable:$true] %s474
          %477 = dma.vmem_to_hbm [thread:$0]  %s475, 128, %s472, [#allocation4]
        $region56: #{tpu_custom_call.1} parent=39 // pred_fallthru
          _
        // Predicated region
        $region57: #{tpu_custom_call.1} parent=39 // pred_check
          %p478 = pneg %p181
        $region58: #{tpu_custom_call.1} parent=39 // pred_check_branch
          %480 = sbr.rel (%p478) target = $region60
        $region59: #{tpu_custom_call.1} parent=39 // pred_region
          %481 = dma.done [#allocation4], 128
        $region60: #{tpu_custom_call.1} parent=39 // pred_fallthru
          _
      $region40: #{tpu_custom_call.1} parent=5 // pred_fallthru
        _
      %p482 = scmp.le.s32.totalorder 2, %s16
      // Predicated region
      $region61: #{tpu_custom_call.1} parent=5 // pred_check
        %p483 = pneg %p482
      $region62: #{tpu_custom_call.1} parent=5 // pred_check_branch
        %485 = sbr.rel (%p483) target = $region64
      $region63: #{tpu_custom_call.1} parent=5 // pred_region
        %s486 = ssub.s32 %s16, 2
      $region64: #{tpu_custom_call.1} parent=5 // pred_fallthru
        _
    $region6: #{tpu_custom_call.1} parent=1 // loop_footer
      %s20 = sadd.s32 1, %s16
    $region7: #{tpu_custom_call.1} parent=1 // loop_footer_branch
      %15 = sbr.rel target = $region3
    $region8: #{tpu_custom_call.1} parent=1 // loop_exit
      _
    %487 = vsyncpa [#allocation3], 1
    %s488 = scalar_lea.sflag [#allocation3], 1
    %489 = vsyncpa %s488, 1
    %490 = vsyncpa [#allocation6], 1
    %s491 = scalar_lea.sflag [#allocation6], 1
    %492 = vsyncpa %s491, 1
    %493 = vsyncpa [#allocation4], 1
    %s494 = scalar_lea.sflag [#allocation4], 1
    %495 = vsyncpa %s494, 1

</llo_original>
